<compile_context>
chip_gen: v6e
topology: v6e:2x2x1
jax: 0.10.0
libtpu: 0.0.40
codegen_flags: <defaults>
</compile_context>

<pallas_src>
import functools

import jax
import jax.numpy as jnp
from jax import lax
from jax.experimental import pallas as pl
from jax.experimental.pallas import tpu as pltpu


def _cdiv(a, b):
    return (a + b - 1) // b


def _round_up(a, b):
    return _cdiv(a, b) * b


def _default_num_parallel():
    """2 on multi-TensorCore chips (v7x), 1 on single-TC chips (v5e/v6e)."""
    try:
        kind = jax.devices()[0].device_kind.lower()
    except Exception:
        return 1
    return 2 if ("v7" in kind or "7x" in kind) else 1


def _weighted_bce_kernel(pred_ref, target_ref,
                         pos_loss_ref, neg_loss_ref, pos_cnt_ref, neg_cnt_ref,
                         pos_loss_acc, neg_loss_acc, pos_cnt_acc, neg_cnt_acc,
                         *, rows_kernel, tiles_per_p, tile_rows, ragged):
    p_idx = pl.program_id(0)            # parallel axis (TensorCore split)
    k_idx = pl.program_id(1)            # sequential reduction axis

    @pl.when(k_idx == 0)
    def _():
        pos_loss_acc[...] = jnp.zeros_like(pos_loss_acc)
        neg_loss_acc[...] = jnp.zeros_like(neg_loss_acc)
        pos_cnt_acc[...] = jnp.zeros_like(pos_cnt_acc)
        neg_cnt_acc[...] = jnp.zeros_like(neg_cnt_acc)

    def fold(x):
        # (tile_rows, 128) -> (8, 128): pure elementwise vreg adds on the VPU,
        # no XLU cross-lane reduction in the hot loop. tile_rows % 8 == 0.
        return jnp.sum(x.reshape(-1, 8, 128), axis=0)

    def accumulate(p, t):
        # Un-negated BCE core  t*log(p) + (1-t)*log(1-p) with PyTorch's -100
        # log clamp; the sign flip happens once in the JAX combine.
        log_p = jnp.maximum(jnp.log(p), -100.0)
        log_1mp = jnp.maximum(jnp.log(1.0 - p), -100.0)
        bce_n = t * (log_p - log_1mp) + log_1mp
        pos = t > 0.5
        neg = t < 0.5
        f0 = jnp.float32(0.0)
        f1 = jnp.float32(1.0)
        pos_loss_acc[...] += fold(jnp.where(pos, bce_n, f0))
        neg_loss_acc[...] += fold(jnp.where(neg, bce_n, f0))
        pos_cnt_acc[...] += fold(jnp.where(pos, f1, f0))
        neg_cnt_acc[...] += fold(jnp.where(neg, f1, f0))

    p = pred_ref[...].astype(jnp.float32)
    t = target_ref[...].astype(jnp.float32)

    if not ragged:
        # Every tile covers only valid rows: no mask work anywhere.
        accumulate(p, t)
    else:
        # Logical (unclamped) row offset of this tile. Only the boundary tile
        # (and clamped duplicate tiles, whose rows are all "invalid") pay for
        # the row mask; interior tiles take the straight-line path.
        row_off = (p_idx * tiles_per_p + k_idx) * tile_rows
        needs_mask = row_off + tile_rows > rows_kernel

        @pl.when(jnp.logical_not(needs_mask))
        def _():
            accumulate(p, t)

        @pl.when(needs_mask)
        def _():
            r = lax.broadcasted_iota(jnp.int32, p.shape, 0)
            valid = (row_off + r) < rows_kernel
            # 0.5 is neutral: finite logs, excluded from both pos and neg.
            accumulate(jnp.where(valid, p, 0.5), jnp.where(valid, t, 0.5))

    @pl.when(k_idx == pl.num_programs(1) - 1)
    def _():
        pos_loss_ref[0] = pos_loss_acc[...]
        neg_loss_ref[0] = neg_loss_acc[...]
        pos_cnt_ref[0] = pos_cnt_acc[...]
        neg_cnt_ref[0] = neg_cnt_acc[...]


def _partial_sums_jax(p, t):
    """Un-negated pos/neg BCE sums + counts for a small slice (tail / tiny N)."""
    p = p.astype(jnp.float32)
    t = t.astype(jnp.float32)
    log_p = jnp.maximum(jnp.log(p), -100.0)
    log_1mp = jnp.maximum(jnp.log(1.0 - p), -100.0)
    bce_n = t * (log_p - log_1mp) + log_1mp
    pos = t > 0.5
    neg = t < 0.5
    return (jnp.sum(jnp.where(pos, bce_n, 0.0)),
            jnp.sum(jnp.where(neg, bce_n, 0.0)),
            jnp.sum(pos.astype(jnp.float32)),
            jnp.sum(neg.astype(jnp.float32)))


def weighted_bce(logit_pixel, truth_pixel, weights=(0.4, 0.6),
                 tile_rows=1024, num_parallel=None):
    """WeightedBCE.forward (n_labels == 1). Returns a scalar f32 loss."""
    # TODO(synk): optional binary-label fast path (single-log BCE, bf16 truth)
    # not enabled to preserve exact soft-label semantics of the PyTorch module.
    w_pos, w_neg = float(weights[0]), float(weights[1])

    pred = logit_pixel.reshape(-1)      # keep native dtype; promote in-kernel
    truth = truth_pixel.reshape(-1)
    n_valid = pred.shape[0]

    rows_full = n_valid // 128
    tail = n_valid - rows_full * 128

    if rows_full < 8:
        # Fewer than 1024 elements: not worth a kernel launch.
        pos_l, neg_l, pos_c, neg_c = _partial_sums_jax(pred, truth)
    else:
        # Lane-dense (rows, 128) view of the 128-aligned prefix. No jnp.pad:
        # when n_valid % 128 == 0 (common case) this is a pure bitcast reshape;
        # otherwise only the <=127-element tail is folded in via JAX below.
        body_pred = pred if tail == 0 else pred[: rows_full * 128]
        body_truth = truth if tail == 0 else truth[: rows_full * 128]
        pred2d = body_pred.reshape(rows_full, 128)
        truth2d = body_truth.reshape(rows_full, 128)

        tile_rows = max(8, _round_up(tile_rows, 8))
        tm = min(tile_rows, (rows_full // 8) * 8)     # multiple of 8, <= rows
        n_tiles = _cdiv(rows_full, tm)

        if num_parallel is None:
            num_parallel = _default_num_parallel()
        n_par = num_parallel if (num_parallel > 1 and n_tiles >= num_parallel) else 1
        tiles_per_p = _cdiv(n_tiles, n_par)

        if n_par > 1 and n_tiles % n_par != 0:
            # Clamp so no block is addressed out of range; the in-kernel row
            # mask zeroes the duplicated tile's contribution.
            def in_map(pi, ki):
                return (jnp.minimum(pi * tiles_per_p + ki, n_tiles - 1), 0)
        else:
            def in_map(pi, ki):
                return (pi * tiles_per_p + ki, 0)

        def out_map(pi, ki):
            return (pi, 0, 0)

        ragged = (rows_full % tm != 0) or (n_par > 1 and n_tiles % n_par != 0)

        kernel = functools.partial(
            _weighted_bce_kernel,
            rows_kernel=rows_full, tiles_per_p=tiles_per_p,
            tile_rows=tm, ragged=ragged)

        part_shape = jax.ShapeDtypeStruct((n_par, 8, 128), jnp.float32)
        out_block = pl.BlockSpec((1, 8, 128), out_map)

        pos_loss, neg_loss, pos_cnt, neg_cnt = pl.pallas_call(
            kernel,
            out_shape=(part_shape,) * 4,
            grid_spec=pltpu.PrefetchScalarGridSpec(
                num_scalar_prefetch=0,
                grid=(n_par, tiles_per_p),
                in_specs=[
                    pl.BlockSpec((tm, 128), in_map),
                    pl.BlockSpec((tm, 128), in_map),
                ],
                out_specs=(out_block,) * 4,
                scratch_shapes=[pltpu.VMEM((8, 128), jnp.float32)] * 4,
            ),
            compiler_params=pltpu.CompilerParams(
                dimension_semantics=("parallel", "arbitrary"),
                vmem_limit_bytes=32 * 1024 * 1024,
            ),
        )(pred2d, truth2d)

        pos_l = jnp.sum(pos_loss)
        neg_l = jnp.sum(neg_loss)
        pos_c = jnp.sum(pos_cnt)
        neg_c = jnp.sum(neg_cnt)

        if tail:
            tpl, tnl, tpc, tnc = _partial_sums_jax(pred[rows_full * 128:],
                                                   truth[rows_full * 128:])
            pos_l = pos_l + tpl
            neg_l = neg_l + tnl
            pos_c = pos_c + tpc
            neg_c = neg_c + tnc

    pos_w = pos_c + 1e-12
    neg_w = neg_c + 1e-12
    # Sign flip (bce = -[t log p + (1-t) log(1-p)]) deferred to this combine.
    return -(w_pos * pos_l / pos_w + w_neg * neg_l / neg_w)


def _reference(logit_pixel, truth_pixel, weights=(0.4, 0.6)):
    p = logit_pixel.reshape(-1).astype(jnp.float32)
    t = truth_pixel.reshape(-1).astype(jnp.float32)
    bce = -(t * jnp.maximum(jnp.log(p), -100.0)
            + (1.0 - t) * jnp.maximum(jnp.log(1.0 - p), -100.0))
    pos = (t > 0.5).astype(jnp.float32)
    neg = (t < 0.5).astype(jnp.float32)
    pos_w = pos.sum() + 1e-12
    neg_w = neg.sum() + 1e-12
    return (weights[0] * pos * bce / pos_w + weights[1] * neg * bce / neg_w).sum()


if __name__ == "__main__":
    key = jax.random.PRNGKey(0)

    # Case 1: n % 128 == 0 -> pure unmasked kernel path.
    kp, kt, key = (*jax.random.split(key, 2), key)
    B, C, H, W = 2, 4, 16, 16
    pred = jax.random.uniform(kp, (B, C, H, W), jnp.float32,
                              minval=1e-4, maxval=1.0 - 1e-4)
    truth = (jax.random.uniform(kt, (B, C, H, W), jnp.float32) > 0.5).astype(jnp.float32)
    loss = jax.block_until_ready(weighted_bce(pred, truth, weights=(0.4, 0.6)))
    ref = _reference(pred, truth, weights=(0.4, 0.6))
    assert jnp.allclose(loss, ref, rtol=1e-4, atol=1e-5), (loss, ref)

    # Case 2: ragged rows + <128-element tail -> masked boundary tile + JAX tail.
    kp2, kt2 = jax.random.split(jax.random.PRNGKey(1))
    shape2 = (2, 3, 17, 13)   # 1326 elements: 10 full rows of 128 + tail of 46
    pred2 = jax.random.uniform(kp2, shape2, jnp.float32,
                               minval=1e-4, maxval=1.0 - 1e-4)
    truth2 = (jax.random.uniform(kt2, shape2, jnp.float32) > 0.5).astype(jnp.float32)
    loss2 = jax.block_until_ready(weighted_bce(pred2, truth2, weights=(0.4, 0.6)))
    ref2 = _reference(pred2, truth2, weights=(0.4, 0.6))
    assert jnp.allclose(loss2, ref2, rtol=1e-4, atol=1e-5), (loss2, ref2)

    print("KERNEL_OK")
</pallas_src>

<mosaic_0001>
module attributes {stable_mosaic.version = 11 : i64} {
  func.func @_weighted_bce_kernel(%arg0: i32, %arg1: i32, %arg2: memref<16x128xf32, #tpu.memory_space<vmem>>, %arg3: memref<16x128xf32, #tpu.memory_space<vmem>>, %arg4: memref<1x8x128xf32, #tpu.memory_space<vmem>>, %arg5: memref<1x8x128xf32, #tpu.memory_space<vmem>>, %arg6: memref<1x8x128xf32, #tpu.memory_space<vmem>>, %arg7: memref<1x8x128xf32, #tpu.memory_space<vmem>>, %arg8: memref<8x128xf32, #tpu.memory_space<vmem>>, %arg9: memref<8x128xf32, #tpu.memory_space<vmem>>, %arg10: memref<8x128xf32, #tpu.memory_space<vmem>>, %arg11: memref<8x128xf32, #tpu.memory_space<vmem>>) attributes {dimension_semantics = [#tpu.dimension_semantics<parallel>, #tpu.dimension_semantics<arbitrary>], iteration_bounds = array<i64: 1, 1>, scalar_prefetch = 0 : i64, scratch_operands = 4 : i64, tpu.core_type = #tpu.core_type<tc>, window_params = [{transform_indices = @transform_0, window_bounds = array<i64: 16, 128>}, {transform_indices = @transform_1, window_bounds = array<i64: 16, 128>}, {transform_indices = @transform_2, window_bounds = array<i64: 1, 8, 128>}, {transform_indices = @transform_3, window_bounds = array<i64: 1, 8, 128>}, {transform_indices = @transform_4, window_bounds = array<i64: 1, 8, 128>}, {transform_indices = @transform_5, window_bounds = array<i64: 1, 8, 128>}]} {
    %c0_i32 = arith.constant 0 : i32
    %0 = arith.cmpi eq, %arg1, %c0_i32 : i32
    %1 = arith.extui %0 : i1 to i32
    %c0_i32_0 = arith.constant 0 : i32
    %2 = arith.cmpi ne, %1, %c0_i32_0 : i32
    scf.if %2 {
      %cst_36 = arith.constant 0.000000e+00 : f32
      %53 = vector.broadcast %cst_36 : f32 to vector<8x128xf32>
      %c0_37 = arith.constant 0 : index
      %c0_38 = arith.constant 0 : index
      %54 = vector.load %arg8[%c0_37, %c0_38] : memref<8x128xf32, #tpu.memory_space<vmem>>, vector<8x128xf32>
      tpu.vector_store %arg8[%c0_37, %c0_38], %53 {strides = array<i32>} : memref<8x128xf32, #tpu.memory_space<vmem>>, vector<8x128xf32>,
      %cst_39 = arith.constant 0.000000e+00 : f32
      %55 = vector.broadcast %cst_39 : f32 to vector<8x128xf32>
      %c0_40 = arith.constant 0 : index
      %c0_41 = arith.constant 0 : index
      %56 = vector.load %arg9[%c0_40, %c0_41] : memref<8x128xf32, #tpu.memory_space<vmem>>, vector<8x128xf32>
      tpu.vector_store %arg9[%c0_40, %c0_41], %55 {strides = array<i32>} : memref<8x128xf32, #tpu.memory_space<vmem>>, vector<8x128xf32>,
      %cst_42 = arith.constant 0.000000e+00 : f32
      %57 = vector.broadcast %cst_42 : f32 to vector<8x128xf32>
      %c0_43 = arith.constant 0 : index
      %c0_44 = arith.constant 0 : index
      %58 = vector.load %arg10[%c0_43, %c0_44] : memref<8x128xf32, #tpu.memory_space<vmem>>, vector<8x128xf32>
      tpu.vector_store %arg10[%c0_43, %c0_44], %57 {strides = array<i32>} : memref<8x128xf32, #tpu.memory_space<vmem>>, vector<8x128xf32>,
      %cst_45 = arith.constant 0.000000e+00 : f32
      %59 = vector.broadcast %cst_45 : f32 to vector<8x128xf32>
      %c0_46 = arith.constant 0 : index
      %c0_47 = arith.constant 0 : index
      %60 = vector.load %arg11[%c0_46, %c0_47] : memref<8x128xf32, #tpu.memory_space<vmem>>, vector<8x128xf32>
      tpu.vector_store %arg11[%c0_46, %c0_47], %59 {strides = array<i32>} : memref<8x128xf32, #tpu.memory_space<vmem>>, vector<8x128xf32>,
    } else {
    }
    %c0 = arith.constant 0 : index
    %c0_1 = arith.constant 0 : index
    %3 = vector.load %arg2[%c0, %c0_1] : memref<16x128xf32, #tpu.memory_space<vmem>>, vector<16x128xf32>
    %c0_2 = arith.constant 0 : index
    %c0_3 = arith.constant 0 : index
    %4 = vector.load %arg3[%c0_2, %c0_3] : memref<16x128xf32, #tpu.memory_space<vmem>>, vector<16x128xf32>
    %5 = math.log %3 : vector<16x128xf32>
    %cst = arith.constant -1.000000e+02 : f32
    %6 = vector.broadcast %cst : f32 to vector<16x128xf32>
    %7 = arith.maximumf %5, %6 : vector<16x128xf32>
    %cst_4 = arith.constant 1.000000e+00 : f32
    %8 = vector.broadcast %cst_4 : f32 to vector<16x128xf32>
    %9 = arith.subf %8, %3 : vector<16x128xf32>
    %10 = math.log %9 : vector<16x128xf32>
    %cst_5 = arith.constant -1.000000e+02 : f32
    %11 = vector.broadcast %cst_5 : f32 to vector<16x128xf32>
    %12 = arith.maximumf %10, %11 : vector<16x128xf32>
    %13 = arith.subf %7, %12 : vector<16x128xf32>
    %14 = arith.mulf %4, %13 : vector<16x128xf32>
    %15 = arith.addf %14, %12 : vector<16x128xf32>
    %cst_6 = arith.constant 5.000000e-01 : f32
    %16 = vector.broadcast %cst_6 : f32 to vector<16x128xf32>
    %17 = arith.cmpf ogt, %4, %16 : vector<16x128xf32>
    %cst_7 = arith.constant 5.000000e-01 : f32
    %18 = vector.broadcast %cst_7 : f32 to vector<16x128xf32>
    %19 = arith.cmpf olt, %4, %18 : vector<16x128xf32>
    %c0_8 = arith.constant 0 : index
    %c0_9 = arith.constant 0 : index
    %20 = vector.load %arg8[%c0_8, %c0_9] : memref<8x128xf32, #tpu.memory_space<vmem>>, vector<8x128xf32>
    %cst_10 = arith.constant 0.000000e+00 : f32
    %21 = vector.broadcast %cst_10 : f32 to vector<16x128xf32>
    %22 = arith.select %17, %15, %21 : vector<16x128xi1>, vector<16x128xf32>
    %23 = vector.shape_cast %22 : vector<16x128xf32> to vector<2x8x128xf32>
    %cst_11 = arith.constant dense<0.000000e+00> : vector<8x128xf32>
    %24 = vector.multi_reduction <add>, %23, %cst_11 [0] : vector<2x8x128xf32> to vector<8x128xf32>
    %25 = arith.addf %20, %24 : vector<8x128xf32>
    %c0_12 = arith.constant 0 : index
    %c0_13 = arith.constant 0 : index
    %26 = vector.load %arg8[%c0_12, %c0_13] : memref<8x128xf32, #tpu.memory_space<vmem>>, vector<8x128xf32>
    tpu.vector_store %arg8[%c0_12, %c0_13], %25 {strides = array<i32>} : memref<8x128xf32, #tpu.memory_space<vmem>>, vector<8x128xf32>,
    %c0_14 = arith.constant 0 : index
    %c0_15 = arith.constant 0 : index
    %27 = vector.load %arg9[%c0_14, %c0_15] : memref<8x128xf32, #tpu.memory_space<vmem>>, vector<8x128xf32>
    %cst_16 = arith.constant 0.000000e+00 : f32
    %28 = vector.broadcast %cst_16 : f32 to vector<16x128xf32>
    %29 = arith.select %19, %15, %28 : vector<16x128xi1>, vector<16x128xf32>
    %30 = vector.shape_cast %29 : vector<16x128xf32> to vector<2x8x128xf32>
    %cst_17 = arith.constant dense<0.000000e+00> : vector<8x128xf32>
    %31 = vector.multi_reduction <add>, %30, %cst_17 [0] : vector<2x8x128xf32> to vector<8x128xf32>
    %32 = arith.addf %27, %31 : vector<8x128xf32>
    %c0_18 = arith.constant 0 : index
    %c0_19 = arith.constant 0 : index
    %33 = vector.load %arg9[%c0_18, %c0_19] : memref<8x128xf32, #tpu.memory_space<vmem>>, vector<8x128xf32>
    tpu.vector_store %arg9[%c0_18, %c0_19], %32 {strides = array<i32>} : memref<8x128xf32, #tpu.memory_space<vmem>>, vector<8x128xf32>,
    %c0_20 = arith.constant 0 : index
    %c0_21 = arith.constant 0 : index
    %34 = vector.load %arg10[%c0_20, %c0_21] : memref<8x128xf32, #tpu.memory_space<vmem>>, vector<8x128xf32>
    %cst_22 = arith.constant 1.000000e+00 : f32
    %cst_23 = arith.constant 0.000000e+00 : f32
    %35 = vector.broadcast %cst_22 : f32 to vector<16x128xf32>
    %36 = vector.broadcast %cst_23 : f32 to vector<16x128xf32>
    %37 = arith.select %17, %35, %36 : vector<16x128xi1>, vector<16x128xf32>
    %38 = vector.shape_cast %37 : vector<16x128xf32> to vector<2x8x128xf32>
    %cst_24 = arith.constant dense<0.000000e+00> : vector<8x128xf32>
    %39 = vector.multi_reduction <add>, %38, %cst_24 [0] : vector<2x8x128xf32> to vector<8x128xf32>
    %40 = arith.addf %34, %39 : vector<8x128xf32>
    %c0_25 = arith.constant 0 : index
    %c0_26 = arith.constant 0 : index
    %41 = vector.load %arg10[%c0_25, %c0_26] : memref<8x128xf32, #tpu.memory_space<vmem>>, vector<8x128xf32>
    tpu.vector_store %arg10[%c0_25, %c0_26], %40 {strides = array<i32>} : memref<8x128xf32, #tpu.memory_space<vmem>>, vector<8x128xf32>,
    %c0_27 = arith.constant 0 : index
    %c0_28 = arith.constant 0 : index
    %42 = vector.load %arg11[%c0_27, %c0_28] : memref<8x128xf32, #tpu.memory_space<vmem>>, vector<8x128xf32>
    %cst_29 = arith.constant 1.000000e+00 : f32
    %cst_30 = arith.constant 0.000000e+00 : f32
    %43 = vector.broadcast %cst_29 : f32 to vector<16x128xf32>
    %44 = vector.broadcast %cst_30 : f32 to vector<16x128xf32>
    %45 = arith.select %19, %43, %44 : vector<16x128xi1>, vector<16x128xf32>
    %46 = vector.shape_cast %45 : vector<16x128xf32> to vector<2x8x128xf32>
    %cst_31 = arith.constant dense<0.000000e+00> : vector<8x128xf32>
    %47 = vector.multi_reduction <add>, %46, %cst_31 [0] : vector<2x8x128xf32> to vector<8x128xf32>
    %48 = arith.addf %42, %47 : vector<8x128xf32>
    %c0_32 = arith.constant 0 : index
    %c0_33 = arith.constant 0 : index
    %49 = vector.load %arg11[%c0_32, %c0_33] : memref<8x128xf32, #tpu.memory_space<vmem>>, vector<8x128xf32>
    tpu.vector_store %arg11[%c0_32, %c0_33], %48 {strides = array<i32>} : memref<8x128xf32, #tpu.memory_space<vmem>>, vector<8x128xf32>,
    %c0_i32_34 = arith.constant 0 : i32
    %50 = arith.cmpi eq, %arg1, %c0_i32_34 : i32
    %51 = arith.extui %50 : i1 to i32
    %c0_i32_35 = arith.constant 0 : i32
    %52 = arith.cmpi ne, %51, %c0_i32_35 : i32
    scf.if %52 {
      %c0_36 = arith.constant 0 : index
      %c0_37 = arith.constant 0 : index
      %53 = vector.load %arg8[%c0_36, %c0_37] : memref<8x128xf32, #tpu.memory_space<vmem>>, vector<8x128xf32>
      %c0_38 = arith.constant 0 : index
      %c0_39 = arith.constant 0 : index
      %c0_40 = arith.constant 0 : index
      %54 = vector.load %arg4[%c0_38, %c0_39, %c0_40] : memref<1x8x128xf32, #tpu.memory_space<vmem>>, vector<1x8x128xf32>
      %55 = vector.shape_cast %54 : vector<1x8x128xf32> to vector<8x128xf32>
      %56 = vector.shape_cast %53 : vector<8x128xf32> to vector<1x8x128xf32>
      tpu.vector_store %arg4[%c0_38, %c0_39, %c0_40], %56 {strides = array<i32>} : memref<1x8x128xf32, #tpu.memory_space<vmem>>, vector<1x8x128xf32>,
      %c0_41 = arith.constant 0 : index
      %c0_42 = arith.constant 0 : index
      %57 = vector.load %arg9[%c0_41, %c0_42] : memref<8x128xf32, #tpu.memory_space<vmem>>, vector<8x128xf32>
      %c0_43 = arith.constant 0 : index
      %c0_44 = arith.constant 0 : index
      %c0_45 = arith.constant 0 : index
      %58 = vector.load %arg5[%c0_43, %c0_44, %c0_45] : memref<1x8x128xf32, #tpu.memory_space<vmem>>, vector<1x8x128xf32>
      %59 = vector.shape_cast %58 : vector<1x8x128xf32> to vector<8x128xf32>
      %60 = vector.shape_cast %57 : vector<8x128xf32> to vector<1x8x128xf32>
      tpu.vector_store %arg5[%c0_43, %c0_44, %c0_45], %60 {strides = array<i32>} : memref<1x8x128xf32, #tpu.memory_space<vmem>>, vector<1x8x128xf32>,
      %c0_46 = arith.constant 0 : index
      %c0_47 = arith.constant 0 : index
      %61 = vector.load %arg10[%c0_46, %c0_47] : memref<8x128xf32, #tpu.memory_space<vmem>>, vector<8x128xf32>
      %c0_48 = arith.constant 0 : index
      %c0_49 = arith.constant 0 : index
      %c0_50 = arith.constant 0 : index
      %62 = vector.load %arg6[%c0_48, %c0_49, %c0_50] : memref<1x8x128xf32, #tpu.memory_space<vmem>>, vector<1x8x128xf32>
      %63 = vector.shape_cast %62 : vector<1x8x128xf32> to vector<8x128xf32>
      %64 = vector.shape_cast %61 : vector<8x128xf32> to vector<1x8x128xf32>
      tpu.vector_store %arg6[%c0_48, %c0_49, %c0_50], %64 {strides = array<i32>} : memref<1x8x128xf32, #tpu.memory_space<vmem>>, vector<1x8x128xf32>,
      %c0_51 = arith.constant 0 : index
      %c0_52 = arith.constant 0 : index
      %65 = vector.load %arg11[%c0_51, %c0_52] : memref<8x128xf32, #tpu.memory_space<vmem>>, vector<8x128xf32>
      %c0_53 = arith.constant 0 : index
      %c0_54 = arith.constant 0 : index
      %c0_55 = arith.constant 0 : index
      %66 = vector.load %arg7[%c0_53, %c0_54, %c0_55] : memref<1x8x128xf32, #tpu.memory_space<vmem>>, vector<1x8x128xf32>
      %67 = vector.shape_cast %66 : vector<1x8x128xf32> to vector<8x128xf32>
      %68 = vector.shape_cast %65 : vector<8x128xf32> to vector<1x8x128xf32>
      tpu.vector_store %arg7[%c0_53, %c0_54, %c0_55], %68 {strides = array<i32>} : memref<1x8x128xf32, #tpu.memory_space<vmem>>, vector<1x8x128xf32>,
    } else {
    }
    return
  }
  func.func @transform_0(%arg0: i32, %arg1: i32) -> (i32, i32) {
    %c1_i32 = arith.constant 1 : i32
    %0 = arith.muli %arg0, %c1_i32 : i32
    %1 = arith.addi %0, %arg1 : i32
    %c0_i32 = arith.constant 0 : i32
    %c0_i32_0 = arith.constant 0 : i32
    return %1, %c0_i32 : i32, i32
  }
  func.func @transform_1(%arg0: i32, %arg1: i32) -> (i32, i32) {
    %c1_i32 = arith.constant 1 : i32
    %0 = arith.muli %arg0, %c1_i32 : i32
    %1 = arith.addi %0, %arg1 : i32
    %c0_i32 = arith.constant 0 : i32
    %c0_i32_0 = arith.constant 0 : i32
    return %1, %c0_i32 : i32, i32
  }
  func.func @transform_2(%arg0: i32, %arg1: i32) -> (i32, i32, i32) {
    %c0_i32 = arith.constant 0 : i32
    %c0_i32_0 = arith.constant 0 : i32
    %c0_i32_1 = arith.constant 0 : i32
    return %arg0, %c0_i32, %c0_i32_0 : i32, i32, i32
  }
  func.func @transform_3(%arg0: i32, %arg1: i32) -> (i32, i32, i32) {
    %c0_i32 = arith.constant 0 : i32
    %c0_i32_0 = arith.constant 0 : i32
    %c0_i32_1 = arith.constant 0 : i32
    return %arg0, %c0_i32, %c0_i32_0 : i32, i32, i32
  }
  func.func @transform_4(%arg0: i32, %arg1: i32) -> (i32, i32, i32) {
    %c0_i32 = arith.constant 0 : i32
    %c0_i32_0 = arith.constant 0 : i32
    %c0_i32_1 = arith.constant 0 : i32
    return %arg0, %c0_i32, %c0_i32_0 : i32, i32, i32
  }
  func.func @transform_5(%arg0: i32, %arg1: i32) -> (i32, i32, i32) {
    %c0_i32 = arith.constant 0 : i32
    %c0_i32_0 = arith.constant 0 : i32
    %c0_i32_1 = arith.constant 0 : i32
    return %arg0, %c0_i32, %c0_i32_0 : i32, i32, i32
  }
}

</mosaic_0001>

<llo_original>
// kernel: tpu_custom_call.1
$region0: #{tpu_custom_call.1}
  #allocation0 [shape = 'u32[]', space=smem, size = 0x4, offset = 0x4, fixed_abs, tag = 'smem constant byte address 0x4 - core index']
  #allocation1 [shape = 'u32[144,128]{1,0:T(1,128)}', space=vmem, size = 0x12000, scoped, tag = 'internal scratch']
  #allocation2 [shape = 'f32[8,128]{1,0:T(8,128)}', space=vmem, size = 0x1000, scoped, tag = 'scratch operand']
  #allocation3 [shape = 'f32[8,128]{1,0:T(8,128)}', space=vmem, size = 0x1000, scoped, tag = 'scratch operand']
  #allocation4 [shape = 'f32[8,128]{1,0:T(8,128)}', space=vmem, size = 0x1000, scoped, tag = 'scratch operand']
  #allocation5 [shape = 'f32[8,128]{1,0:T(8,128)}', space=vmem, size = 0x1000, scoped, tag = 'scratch operand']
  %s0 = inlined_call_operand.hbm [shape: f32[16,128], index: 0, kind: input, shape index: {}]
  %s1 = inlined_call_operand.hbm [shape: f32[16,128], index: 1, kind: input, shape index: {}]
  %s2 = inlined_call_operand.hbm [shape: f32[1,8,128], index: 2, kind: output, shape index: {0}]
  %s3 = inlined_call_operand.hbm [shape: f32[1,8,128], index: 3, kind: output, shape index: {1}]
  %s4 = inlined_call_operand.hbm [shape: f32[1,8,128], index: 4, kind: output, shape index: {2}]
  %s5 = inlined_call_operand.hbm [shape: f32[1,8,128], index: 5, kind: output, shape index: {3}]
  %6 = xla_tuple %s2, %s3, %s4, %s5
  %s7 = sld [smem:[#allocation0]]
  $region58: #{tpu_custom_call.1} parent=0
    _
  %s9 = ssub.s32 1, %s7
  %s10 = scalar_select 0, %s9, %s7
  $region1: #{tpu_custom_call.1} parent=0
    #allocation6 [shape = 'u8[8192]{0}', space=vmem, size = 0x2000, scoped, tag = 'input window, operand 0, single buffered']
    #allocation7 [shape = 's32[1]{0}', space=sflag, size = 0x4, scoped, tag = 'scoped memory for tpu_custom_call.1']
    #allocation8 [shape = 's32[1]{0}', space=sflag, size = 0x4, scoped, tag = 'scoped memory for tpu_custom_call.1']
    #allocation9 [shape = 'u8[8192]{0}', space=vmem, size = 0x2000, scoped, tag = 'input window, operand 1, single buffered']
    #allocation10 [shape = 's32[1]{0}', space=sflag, size = 0x4, scoped, tag = 'scoped memory for tpu_custom_call.1']
    #allocation11 [shape = 'u8[4096]{0}', space=vmem, size = 0x1000, scoped, tag = 'output window, operand 0, single buffered']
    #allocation12 [shape = 'u8[4096]{0}', space=vmem, size = 0x1000, scoped, tag = 'output window, operand 1, single buffered']
    #allocation13 [shape = 's32[1]{0}', space=sflag, size = 0x4, scoped, tag = 'scoped memory for tpu_custom_call.1']
    #allocation14 [shape = 'u8[4096]{0}', space=vmem, size = 0x1000, scoped, tag = 'output window, operand 2, single buffered']
    #allocation15 [shape = 'u8[4096]{0}', space=vmem, size = 0x1000, scoped, tag = 'output window, operand 3, single buffered']
    #allocation16 [shape = 's32[1]{0}', space=sflag, size = 0x4, scoped, tag = 'scoped memory for tpu_custom_call.1']
    %11 = vsyncpa [#allocation7], 0
    %12 = vsyncpa [#allocation10], 0
    %13 = vsyncpa [#allocation8], 0
    %14 = vsyncpa [#allocation13], 0
    %15 = vsyncpa [#allocation16], 0
    // Predicated region
    $region2: #{tpu_custom_call.1} parent=1 // pred_check
      _
    $region3: #{tpu_custom_call.1} parent=1 // pred_check_branch
      %17 = sbr.rel (0) target = $region5
    $region4: #{tpu_custom_call.1} parent=1 // pred_region
      %s18 = sadd.s32 0, 0
      %s19 = smul.u32 2, %s18
      %s21 = ssub.s32 256, 256
      %22 = vsyncadd [#allocation7], %s21
      %s23 = smul.addr %s19, 128
      %s24 = scalar_lea.hbm %s0, %s23
      %s25 = sshll.u32 [#allocation6], 4
      %s26 = int_to_ptr.vmem [resolvable:$true] %s25
      %31 = dma.hbm_to_vmem [thread:$0]  %s24, 256, %s26, [#allocation7], 128, 128, 8
    $region5: #{tpu_custom_call.1} parent=1 // pred_fallthru
      _
    // Predicated region
    $region6: #{tpu_custom_call.1} parent=1 // pred_check
      _
    $region7: #{tpu_custom_call.1} parent=1 // pred_check_branch
      %33 = sbr.rel (0) target = $region9
    $region8: #{tpu_custom_call.1} parent=1 // pred_region
      %s34 = sadd.s32 0, 0
      %s35 = smul.u32 2, %s34
      %s37 = ssub.s32 256, 256
      %38 = vsyncadd [#allocation10], %s37
      %s39 = smul.addr %s35, 128
      %s40 = scalar_lea.hbm %s1, %s39
      %s41 = sshll.u32 [#allocation9], 4
      %s42 = int_to_ptr.vmem [resolvable:$true] %s41
      %47 = dma.hbm_to_vmem [thread:$0]  %s40, 256, %s42, [#allocation10], 128, 128, 8
    $region9: #{tpu_custom_call.1} parent=1 // pred_fallthru
      _
    // Predicated region
    $region10: #{tpu_custom_call.1} parent=1 // pred_check
      _
    $region11: #{tpu_custom_call.1} parent=1 // pred_check_branch
      %49 = sbr.rel (0) target = $region13
    $region12: #{tpu_custom_call.1} parent=1 // pred_region
      %50 = dma.done [#allocation7], 256
    $region13: #{tpu_custom_call.1} parent=1 // pred_fallthru
      _
    // Predicated region
    $region14: #{tpu_custom_call.1} parent=1 // pred_check
      _
    $region15: #{tpu_custom_call.1} parent=1 // pred_check_branch
      %52 = sbr.rel (0) target = $region17
    $region16: #{tpu_custom_call.1} parent=1 // pred_region
      %53 = dma.done [#allocation10], 256
    $region17: #{tpu_custom_call.1} parent=1 // pred_fallthru
      _
    %s54 = sadd.s32 0, 0
    %s55 = smul.u32 2, %s54
    %s56 = sadd.s32 0, 0
    %s57 = smul.u32 2, %s56
    %p58 = scmp.eq.s32.totalorder 0, 0
    // Predicated region
    $region18: #{tpu_custom_call.1} parent=1 // pred_check
      %p59 = pneg %p58
    $region19: #{tpu_custom_call.1} parent=1 // pred_check_branch
      %61 = sbr.rel (%p59) target = $region21
    $region20: #{tpu_custom_call.1} parent=1 // pred_region
      %62 = vst [vmem:[#allocation2] sm:$0xff] 0.0
      %63 = vst [vmem:[#allocation3] sm:$0xff] 0.0
      %64 = vst [vmem:[#allocation4] sm:$0xff] 0.0
      %65 = vst [vmem:[#allocation5] sm:$0xff] 0.0
    $region21: #{tpu_custom_call.1} parent=1 // pred_fallthru
      _
    %v66 = vld [vmem:[#allocation6] sm:$0xff]
    %v67 = vld [vmem:[#allocation6 + $0x8] sm:$0xff]
    %v68 = vld [vmem:[#allocation9] sm:$0xff]
    %v69 = vld [vmem:[#allocation9 + $0x8] sm:$0xff]
    %v70 = vlog2.pop %v66
    %v71 = vmul.f32 %v70, 0.6931472
    %v72 = vlog2.pop %v67
    %v73 = vmul.f32 %v72, 0.6931472
    %v74 = vmax.f32 %v71, -100.0
    %v75 = vmax.f32 %v73, -100.0
    %v76 = vsub.f32 1.0, %v66
    %v77 = vsub.f32 1.0, %v67
    %v78 = vlog2.pop %v76
    %v79 = vmul.f32 %v78, 0.6931472
    %v80 = vlog2.pop %v77
    %v81 = vmul.f32 %v80, 0.6931472
    %v82 = vmax.f32 %v79, -100.0
    %v83 = vmax.f32 %v81, -100.0
    %v84 = vsub.f32 %v74, %v82
    %v85 = vsub.f32 %v75, %v83
    %v86 = vmul.f32 %v68, %v84
    %v87 = vmul.f32 %v69, %v85
    %v88 = vadd.f32 %v86, %v82
    %v89 = vadd.f32 %v87, %v83
    %vm90 = vcmp.gt.f32.partialorder %v68, 0.5
    %vm91 = vcmp.gt.f32.partialorder %v69, 0.5
    %vm92 = vcmp.lt.f32.partialorder %v68, 0.5
    %vm93 = vcmp.lt.f32.partialorder %v69, 0.5
    %v94 = vld [vmem:[#allocation2] sm:$0xff]
    %v95 = vsel %vm90, %v88, 0.0
    %v96 = vsel %vm91, %v89, 0.0
    %v97 = vadd.f32 %v95, %v96
    %v98 = vadd.f32 %v94, %v97
    %99 = vst [vmem:[#allocation2] sm:$0xff] %v98
    %v100 = vld [vmem:[#allocation3] sm:$0xff]
    %v101 = vsel %vm92, %v88, 0.0
    %v102 = vsel %vm93, %v89, 0.0
    %v103 = vadd.f32 %v101, %v102
    %v104 = vadd.f32 %v100, %v103
    %105 = vst [vmem:[#allocation3] sm:$0xff] %v104
    %v106 = vld [vmem:[#allocation4] sm:$0xff]
    %v107 = vsel %vm90, 1.0, 0.0
    %v108 = vsel %vm91, 1.0, 0.0
    %v109 = vadd.f32 %v107, %v108
    %v110 = vadd.f32 %v106, %v109
    %111 = vst [vmem:[#allocation4] sm:$0xff] %v110
    %v112 = vld [vmem:[#allocation5] sm:$0xff]
    %v113 = vsel %vm92, 1.0, 0.0
    %v114 = vsel %vm93, 1.0, 0.0
    %v115 = vadd.f32 %v113, %v114
    %v116 = vadd.f32 %v112, %v115
    %117 = vst [vmem:[#allocation5] sm:$0xff] %v116
    // Predicated region
    $region22: #{tpu_custom_call.1} parent=1 // pred_check
      %p118 = pneg %p58
    $region23: #{tpu_custom_call.1} parent=1 // pred_check_branch
      %120 = sbr.rel (%p118) target = $region25
    $region24: #{tpu_custom_call.1} parent=1 // pred_region
      %v121 = vld [vmem:[#allocation2] sm:$0xff]
      %122 = vst [vmem:[#allocation11] sm:$0xff] %v121
      %v123 = vld [vmem:[#allocation3] sm:$0xff]
      %124 = vst [vmem:[#allocation12] sm:$0xff] %v123
      %v125 = vld [vmem:[#allocation4] sm:$0xff]
      %126 = vst [vmem:[#allocation14] sm:$0xff] %v125
      %v127 = vld [vmem:[#allocation5] sm:$0xff]
      %128 = vst [vmem:[#allocation15] sm:$0xff] %v127
    $region25: #{tpu_custom_call.1} parent=1 // pred_fallthru
      _
    // Predicated region
    $region26: #{tpu_custom_call.1} parent=1 // pred_check
      _
    $region27: #{tpu_custom_call.1} parent=1 // pred_check_branch
      %130 = sbr.rel (0) target = $region29
    $region28: #{tpu_custom_call.1} parent=1 // pred_region
      %s132 = ssub.s32 128, 128
      %133 = vsyncadd [#allocation8], %s132
      %s135 = sshll.u32 [#allocation11], 4
      %s136 = int_to_ptr.vmem [resolvable:$true] %s135
      %138 = dma.vmem_to_hbm [thread:$0]  %s136, 128, %s2, [#allocation8]
    $region29: #{tpu_custom_call.1} parent=1 // pred_fallthru
      _
    // Predicated region
    $region30: #{tpu_custom_call.1} parent=1 // pred_check
      _
    $region31: #{tpu_custom_call.1} parent=1 // pred_check_branch
      %140 = sbr.rel (0) target = $region33
    $region32: #{tpu_custom_call.1} parent=1 // pred_region
      %s142 = ssub.s32 128, 128
      %143 = vsyncadd [#allocation13], %s142
      %s145 = sshll.u32 [#allocation12], 4
      %s146 = int_to_ptr.vmem [resolvable:$true] %s145
      %148 = dma.vmem_to_hbm [thread:$0]  %s146, 128, %s3, [#allocation13]
    $region33: #{tpu_custom_call.1} parent=1 // pred_fallthru
      _
    // Predicated region
    $region34: #{tpu_custom_call.1} parent=1 // pred_check
      _
    $region35: #{tpu_custom_call.1} parent=1 // pred_check_branch
      %150 = sbr.rel (0) target = $region37
    $region36: #{tpu_custom_call.1} parent=1 // pred_region
      %s152 = ssub.s32 128, 128
      %153 = vsyncadd [#allocation13], %s152
      %s155 = sshll.u32 [#allocation14], 4
      %s156 = int_to_ptr.vmem [resolvable:$true] %s155
      %158 = dma.vmem_to_hbm [thread:$0]  %s156, 128, %s4, [#allocation13]
    $region37: #{tpu_custom_call.1} parent=1 // pred_fallthru
      _
    // Predicated region
    $region38: #{tpu_custom_call.1} parent=1 // pred_check
      _
    $region39: #{tpu_custom_call.1} parent=1 // pred_check_branch
      %160 = sbr.rel (0) target = $region41
    $region40: #{tpu_custom_call.1} parent=1 // pred_region
      %s162 = ssub.s32 128, 128
      %163 = vsyncadd [#allocation16], %s162
      %s165 = sshll.u32 [#allocation15], 4
      %s166 = int_to_ptr.vmem [resolvable:$true] %s165
      %168 = dma.vmem_to_hbm [thread:$0]  %s166, 128, %s5, [#allocation16]
    $region41: #{tpu_custom_call.1} parent=1 // pred_fallthru
      _
    // Predicated region
    $region42: #{tpu_custom_call.1} parent=1 // pred_check
      _
    $region43: #{tpu_custom_call.1} parent=1 // pred_check_branch
      %170 = sbr.rel (0) target = $region45
    $region44: #{tpu_custom_call.1} parent=1 // pred_region
      %171 = dma.done [#allocation8], 128
    $region45: #{tpu_custom_call.1} parent=1 // pred_fallthru
      _
    // Predicated region
    $region46: #{tpu_custom_call.1} parent=1 // pred_check
      _
    $region47: #{tpu_custom_call.1} parent=1 // pred_check_branch
      %173 = sbr.rel (0) target = $region49
    $region48: #{tpu_custom_call.1} parent=1 // pred_region
      %174 = dma.done [#allocation13], 128
    $region49: #{tpu_custom_call.1} parent=1 // pred_fallthru
      _
    // Predicated region
    $region50: #{tpu_custom_call.1} parent=1 // pred_check
      _
    $region51: #{tpu_custom_call.1} parent=1 // pred_check_branch
      %176 = sbr.rel (0) target = $region53
    $region52: #{tpu_custom_call.1} parent=1 // pred_region
      %177 = dma.done [#allocation13], 128
    $region53: #{tpu_custom_call.1} parent=1 // pred_fallthru
      _
    // Predicated region
    $region54: #{tpu_custom_call.1} parent=1 // pred_check
      _
    $region55: #{tpu_custom_call.1} parent=1 // pred_check_branch
      %179 = sbr.rel (0) target = $region57
    $region56: #{tpu_custom_call.1} parent=1 // pred_region
      %180 = dma.done [#allocation16], 128
    $region57: #{tpu_custom_call.1} parent=1 // pred_fallthru
      _
    %181 = vsyncpa [#allocation7], 1
    %182 = vsyncpa [#allocation10], 1
    %183 = vsyncpa [#allocation8], 1
    %184 = vsyncpa [#allocation13], 1
    %185 = vsyncpa [#allocation16], 1

</llo_original>
